<compile_context>
chip_gen: v5e
topology: v5e:2x2
jax: 0.10.0
libtpu: 0.0.40
codegen_flags: <defaults>
</compile_context>

<pallas_src>
import functools

import jax
import jax.numpy as jnp
from jax.experimental import pallas as pl
from jax.experimental.pallas import tpu as pltpu


def _linear_kernel(x_ref, w_ref, b_ref, o_ref):
    # logits = x @ W + b, f32 accumulate on the MXU.
    logits = jnp.dot(x_ref[...], w_ref[...], preferred_element_type=jnp.float32)
    o_ref[...] = (logits + b_ref[...]).astype(o_ref.dtype)


def _dropout_linear_kernel(bits_ref, x_ref, w_ref, b_ref, o_ref, *, threshold):
    # Integer-compare dropout mask: keep iff bits >= p * 2^32  (P(keep) = 1-p).
    keep = bits_ref[...] >= jnp.uint32(threshold)
    x = jnp.where(keep, x_ref[...], jnp.zeros_like(x_ref[...]))
    # 1/(1-p) scale is already folded into w_ref by the wrapper.
    logits = jnp.dot(x, w_ref[...], preferred_element_type=jnp.float32)
    o_ref[...] = (logits + b_ref[...]).astype(o_ref.dtype)


def _round_up(x, m):
    return (x + m - 1) // m * m


def discriminator_forward(hidden_states, weight, bias, *,
                          dropout_p=0.1, train=False, rng_key=None):
    """hidden_states: [..., H]; weight: [H, N] (transposed vs torch); bias: [N]."""
    orig_shape = hidden_states.shape
    H = orig_shape[-1]
    N = weight.shape[1]
    dtype = hidden_states.dtype
    itemsize = jnp.dtype(dtype).itemsize

    x2d = hidden_states.reshape(-1, H)
    M = x2d.shape[0]

    use_dropout = bool(train) and float(dropout_p) > 0.0

    # Lane-dense output width.
    Npad = _round_up(N, 128)

    # Row-tile size: >= 8, multiple of 8, capped so 2 pipeline buffers of the
    # input tile(s) stay far below the v7x (64 MiB physical / ~32 MiB scoped)
    # VMEM budget.
    bytes_per_row = H * (itemsize + (4 if use_dropout else 0))
    tm_cap = max(8, (((16 << 20) // (2 * bytes_per_row)) // 8) * 8)
    TM = min(512, tm_cap, _round_up(M, 8))
    M_pad = _round_up(M, TM)
    grid = M_pad // TM

    if M_pad != M:
        x2d = jnp.pad(x2d, ((0, M_pad - M), (0, 0)))

    # Pad weight/bias to the lane-dense width (zeros contribute nothing).
    w_pad = jnp.zeros((H, Npad), dtype=weight.dtype).at[:, :N].set(weight)
    b_pad = jnp.zeros((1, Npad), dtype=jnp.float32).at[0, :N].set(
        bias.astype(jnp.float32))
    if use_dropout:
        # Fold the inverted-dropout 1/(1-p) scale into the tiny weight once.
        w_pad = w_pad / jnp.asarray(1.0 - float(dropout_p), w_pad.dtype)

    x_spec = pl.BlockSpec((TM, H), lambda i: (i, 0))
    w_spec = pl.BlockSpec((H, Npad), lambda i: (0, 0))
    b_spec = pl.BlockSpec((1, Npad), lambda i: (0, 0))
    o_spec = pl.BlockSpec((TM, Npad), lambda i: (i, 0))
    out_shape = jax.ShapeDtypeStruct((M_pad, Npad), dtype)

    cost = pl.CostEstimate(
        flops=2 * M_pad * H * Npad,
        transcendentals=0,
        bytes_accessed=(M_pad * H * itemsize + H * Npad * itemsize
                        + M_pad * Npad * itemsize
                        + (M_pad * H * 4 if use_dropout else 0)),
    )
    cparams = pltpu.CompilerParams(dimension_semantics=("parallel",))

    if use_dropout:
        if rng_key is None:
            rng_key = jax.random.PRNGKey(0)
        # Uniform uint32 bits, one per activation element (unique per row tile).
        bits = jax.random.bits(rng_key, (M_pad, H), dtype=jnp.uint32)
        threshold = min(int(round(float(dropout_p) * 2.0 ** 32)), 2 ** 32 - 1)
        # TODO(synk): bit-exact parity with torch's RNG stream is not reproduced;
        # dropout is statistically equivalent (inverted dropout, keep prob 1-p).
        kernel = functools.partial(_dropout_linear_kernel, threshold=threshold)
        out2d = pl.pallas_call(
            kernel,
            out_shape=out_shape,
            grid=(grid,),
            in_specs=[pl.BlockSpec((TM, H), lambda i: (i, 0)),  # bits
                      x_spec, w_spec, b_spec],
            out_specs=o_spec,
            compiler_params=cparams,
            cost_estimate=cost,
        )(bits, x2d, w_pad, b_pad)
    else:
        out2d = pl.pallas_call(
            _linear_kernel,
            out_shape=out_shape,
            grid=(grid,),
            in_specs=[x_spec, w_spec, b_spec],
            out_specs=o_spec,
            compiler_params=cparams,
            cost_estimate=cost,
        )(x2d, w_pad, b_pad)

    out2d = out2d[:M, :N]
    return out2d.reshape(*orig_shape[:-1], N)


def init_params(key, output_feature, num_labels):
    """Mirror nn.Linear default init (uniform +/- 1/sqrt(fan_in)); weight stored [in, out]."""
    kw, kb = jax.random.split(key)
    bound = 1.0 / (output_feature ** 0.5)
    weight = jax.random.uniform(kw, (output_feature, num_labels),
                                minval=-bound, maxval=bound, dtype=jnp.float32)
    bias = jax.random.uniform(kb, (num_labels,),
                              minval=-bound, maxval=bound, dtype=jnp.float32)
    return weight, bias


if __name__ == "__main__":
    # config: output_feature=32, num_labels=4, dropout_prob=0.1
    batch, seq, hidden, num_labels = 2, 8, 32, 4
    dropout_p = 0.1

    key = jax.random.PRNGKey(0)
    k_x, k_p, k_d = jax.random.split(key, 3)
    hidden_states = jax.random.normal(k_x, (batch, seq, hidden),
                                      dtype=jnp.float32)
    weight, bias = init_params(k_p, hidden, num_labels)

    # Eval mode (nn.Dropout is identity) -- exact reference check.
    logits = discriminator_forward(hidden_states, weight, bias,
                                   dropout_p=dropout_p, train=False)
    jax.block_until_ready(logits)
    ref = (hidden_states.reshape(-1, hidden) @ weight + bias)
    ref = ref.reshape(batch, seq, num_labels)
    assert logits.shape == (batch, seq, num_labels)
    assert jnp.allclose(logits, ref, atol=1e-5, rtol=1e-5)

    # Train mode (inverted dropout via in-kernel integer mask) -- sanity check.
    logits_train = discriminator_forward(hidden_states, weight, bias,
                                         dropout_p=dropout_p, train=True,
                                         rng_key=k_d)
    jax.block_until_ready(logits_train)
    assert logits_train.shape == (batch, seq, num_labels)
    assert bool(jnp.all(jnp.isfinite(logits_train)))

    print("KERNEL_OK")
</pallas_src>

<mosaic_0001>
module attributes {stable_mosaic.version = 11 : i64} {
  func.func @_linear_kernel(%arg0: i32, %arg1: memref<16x32xf32, #tpu.memory_space<vmem>>, %arg2: memref<32x128xf32, #tpu.memory_space<vmem>>, %arg3: memref<1x128xf32, #tpu.memory_space<vmem>>, %arg4: memref<16x128xf32, #tpu.memory_space<vmem>>) attributes {dimension_semantics = [#tpu.dimension_semantics<parallel>], iteration_bounds = array<i64: 1>, scalar_prefetch = 0 : i64, scratch_operands = 0 : i64, tpu.core_type = #tpu.core_type<tc>, window_params = [{transform_indices = @transform_0, window_bounds = array<i64: 16, 32>}, {pipeline_mode = #tpu.pipeline_mode<synchronous>, transform_indices = @transform_1, window_bounds = array<i64: 32, 128>}, {pipeline_mode = #tpu.pipeline_mode<synchronous>, transform_indices = @transform_2, window_bounds = array<i64: 1, 128>}, {transform_indices = @transform_3, window_bounds = array<i64: 16, 128>}]} {
    %c0 = arith.constant 0 : index
    %c0_0 = arith.constant 0 : index
    %0 = vector.load %arg1[%c0, %c0_0] : memref<16x32xf32, #tpu.memory_space<vmem>>, vector<16x32xf32>
    %c0_1 = arith.constant 0 : index
    %c0_2 = arith.constant 0 : index
    %1 = vector.load %arg2[%c0_1, %c0_2] : memref<32x128xf32, #tpu.memory_space<vmem>>, vector<32x128xf32>
    %cst = arith.constant dense<0.000000e+00> : vector<16x128xf32>
    %2 = tpu.matmul %0, %1, %cst {dimension_numbers = #tpu.dot_dimension_numbers<[1], [0], [0], [1], [0, 0, 1, 1], [], []>} : vector<16x32xf32>, vector<32x128xf32>, vector<16x128xf32> -> vector<16x128xf32>
    %c0_3 = arith.constant 0 : index
    %c0_4 = arith.constant 0 : index
    %3 = vector.load %arg3[%c0_3, %c0_4] : memref<1x128xf32, #tpu.memory_space<vmem>>, vector<1x128xf32>
    %4 = vector.broadcast %3 : vector<1x128xf32> to vector<16x128xf32>
    %5 = arith.addf %2, %4 : vector<16x128xf32>
    %c0_5 = arith.constant 0 : index
    %c0_6 = arith.constant 0 : index
    %6 = vector.load %arg4[%c0_5, %c0_6] : memref<16x128xf32, #tpu.memory_space<vmem>>, vector<16x128xf32>
    tpu.vector_store %arg4[%c0_5, %c0_6], %5 {strides = array<i32>} : memref<16x128xf32, #tpu.memory_space<vmem>>, vector<16x128xf32>,
    return
  }
  func.func @transform_0(%arg0: i32) -> (i32, i32) {
    %c0_i32 = arith.constant 0 : i32
    %c0_i32_0 = arith.constant 0 : i32
    return %arg0, %c0_i32 : i32, i32
  }
  func.func @transform_1(%arg0: i32) -> (i32, i32) {
    %c0_i32 = arith.constant 0 : i32
    %c0_i32_0 = arith.constant 0 : i32
    %c0_i32_1 = arith.constant 0 : i32
    return %c0_i32, %c0_i32_0 : i32, i32
  }
  func.func @transform_2(%arg0: i32) -> (i32, i32) {
    %c0_i32 = arith.constant 0 : i32
    %c0_i32_0 = arith.constant 0 : i32
    %c0_i32_1 = arith.constant 0 : i32
    return %c0_i32, %c0_i32_0 : i32, i32
  }
  func.func @transform_3(%arg0: i32) -> (i32, i32) {
    %c0_i32 = arith.constant 0 : i32
    %c0_i32_0 = arith.constant 0 : i32
    return %arg0, %c0_i32 : i32, i32
  }
}

</mosaic_0001>

<llo_original>
// kernel: tpu_custom_call.1
$region0: #{tpu_custom_call.1}
  #allocation0 [shape = 'u32[]', space=smem, size = 0x4, offset = 0x4, fixed_abs, tag = 'smem constant byte address 0x4 - core index']
  #allocation1 [shape = 'u32[72,128]{1,0:T(1,128)}', space=vmem, size = 0x9000, scoped, tag = 'internal scratch']
  %s0 = inlined_call_operand.hbm [shape: f32[16,32], index: 0, kind: input, shape index: {}]
  %s1 = inlined_call_operand.hbm [shape: f32[32,128], index: 1, kind: input, shape index: {}]
  %s2 = inlined_call_operand.vmem [shape: f32[1,128], index: 2, kind: input, shape index: {}]
  %s3 = inlined_call_operand.hbm [shape: f32[16,128], index: 3, kind: output, shape index: {}]
  %s4 = sld [smem:[#allocation0]]
  $region30: #{tpu_custom_call.1} parent=0
    _
  %s6 = ssub.s32 1, %s4
  %s7 = scalar_select 0, %s6, %s4
  $region1: #{tpu_custom_call.1} parent=0
    #allocation2 [shape = 'u8[8192]{0}', space=vmem, size = 0x2000, scoped, tag = 'input window, operand 0, single buffered']
    #allocation3 [shape = 's32[1]{0}', space=sflag, size = 0x4, scoped, tag = 'scoped memory for tpu_custom_call.1']
    #allocation4 [shape = 's32[1]{0}', space=sflag, size = 0x4, scoped, tag = 'scoped memory for tpu_custom_call.1']
    #allocation5 [shape = 'u8[16384]{0}', space=vmem, size = 0x4000, scoped, tag = 'input window, operand 1, single buffered']
    #allocation6 [shape = 's32[1]{0}', space=sflag, size = 0x4, scoped, tag = 'scoped memory for tpu_custom_call.1']
    #allocation7 [shape = 'u8[8192]{0}', space=vmem, size = 0x2000, scoped, tag = 'output window, operand 0, single buffered']
    %8 = vsyncpa [#allocation3], 0
    %9 = vsyncpa [#allocation6], 0
    %10 = vsyncpa [#allocation4], 0
    // Predicated region
    $region2: #{tpu_custom_call.1} parent=1 // pred_check
      _
    $region3: #{tpu_custom_call.1} parent=1 // pred_check_branch
      %12 = sbr.rel (0) target = $region5
    $region4: #{tpu_custom_call.1} parent=1 // pred_region
      %14 = vsyncadd [#allocation3], 0
      %s15 = sshll.u32 %s0, 4
      %s16 = int_to_ptr.hbm [resolvable:$true] %s15
      %s17 = sshll.u32 [#allocation2], 4
      %s18 = int_to_ptr.vmem [resolvable:$true] %s17
      %23 = dma.hbm_to_vmem [thread:$0]  %s16, 256, %s18, [#allocation3], 128, 128, 8
    $region5: #{tpu_custom_call.1} parent=1 // pred_fallthru
      _
    // Predicated region
    $region6: #{tpu_custom_call.1} parent=1 // pred_check
      _
    $region7: #{tpu_custom_call.1} parent=1 // pred_check_branch
      %25 = sbr.rel (0) target = $region9
    $region8: #{tpu_custom_call.1} parent=1 // pred_region
      %27 = vsyncadd [#allocation6], 0
      %s28 = sshll.u32 %s1, 4
      %s29 = int_to_ptr.hbm [resolvable:$true] %s28
      %s30 = sshll.u32 [#allocation5], 4
      %s31 = int_to_ptr.vmem [resolvable:$true] %s30
      %36 = dma.hbm_to_vmem [thread:$0]  %s29, 512, %s31, [#allocation6], 128, 128, 8
    $region9: #{tpu_custom_call.1} parent=1 // pred_fallthru
      _
    // Predicated region
    $region10: #{tpu_custom_call.1} parent=1 // pred_check
      _
    $region11: #{tpu_custom_call.1} parent=1 // pred_check_branch
      %38 = sbr.rel (0) target = $region13
    $region12: #{tpu_custom_call.1} parent=1 // pred_region
      _
    $region13: #{tpu_custom_call.1} parent=1 // pred_fallthru
      _
    // Predicated region
    $region14: #{tpu_custom_call.1} parent=1 // pred_check
      _
    $region15: #{tpu_custom_call.1} parent=1 // pred_check_branch
      %40 = sbr.rel (0) target = $region17
    $region16: #{tpu_custom_call.1} parent=1 // pred_region
      %42 = dma.done [#allocation3], 256
    $region17: #{tpu_custom_call.1} parent=1 // pred_fallthru
      _
    // Predicated region
    $region18: #{tpu_custom_call.1} parent=1 // pred_check
      _
    $region19: #{tpu_custom_call.1} parent=1 // pred_check_branch
      %44 = sbr.rel (0) target = $region21
    $region20: #{tpu_custom_call.1} parent=1 // pred_region
      %46 = dma.done [#allocation6], 512
    $region21: #{tpu_custom_call.1} parent=1 // pred_fallthru
      _
    %v47 = vld [vmem:[#allocation2] sm:$0xff]
    %v48 = vld [vmem:[#allocation2 + $0x8] sm:$0xff]
    %v49 = vld [vmem:[#allocation5] sm:$0xff]
    %v50 = vld [vmem:[#allocation5 + $0x8] sm:$0xff]
    %v51 = vld [vmem:[#allocation5 + $0x10] sm:$0xff]
    %v52 = vld [vmem:[#allocation5 + $0x18] sm:$0xff]
    %v53 = vld [vmem:[%s2] sm:$0x1]
    %v55 = vperm.slane %v53, 0
    %vm57 = vcmask 261120
    %v59 = vsel %vm57, %v47, 0
    %v62 = vsel %vm57, %v48, 0
    %64 = vmatpush.msra.mxu0 0.0
    %65 = vmatpush.msra.mxu0 0.0
    %66 = vmatpush.msra.mxu0 0.0
    %67 = vmatpush.msra.mxu0 0.0
    %68 = vmatpush.msra.mxu0 0.0
    %69 = vmatpush.msra.mxu0 0.0
    %70 = vmatpush.msra.mxu0 0.0
    %71 = vmatpush.msra.mxu0 0.0
    %72 = vmatpush.msra.mxu0 0.0
    %73 = vmatpush.msra.mxu0 0.0
    %74 = vmatpush.msra.mxu0 0.0
    %75 = vmatpush.msra.mxu0 0.0
    %76 = vmatpush.msra.mxu0 %v52
    %77 = vmatpush.msra.mxu0 %v51
    %78 = vmatpush.msra.mxu0 %v50
    %79 = vmatpush.msra.mxu0 %v49
    %80 = vmatmul.f32.gmra.mxu0 %v59
    %v81 = vpop.f32.mrf.mxu0
    %v82 = vadd.f32 %v55, %v81
    %83 = vmatmul.f32.gmra.mxu0 %v62
    %v84 = vpop.f32.mrf.mxu0
    %v85 = vadd.f32 %v55, %v84
    %86 = vdwg.mxu0
    %87 = vst [vmem:[#allocation7] sm:$0xff] %v82
    %88 = vst [vmem:[#allocation7 + $0x8] sm:$0xff] %v85
    // Predicated region
    $region22: #{tpu_custom_call.1} parent=1 // pred_check
      _
    $region23: #{tpu_custom_call.1} parent=1 // pred_check_branch
      %90 = sbr.rel (0) target = $region25
    $region24: #{tpu_custom_call.1} parent=1 // pred_region
      %92 = vsyncadd [#allocation4], 0
      %s93 = sshll.u32 [#allocation7], 4
      %s94 = int_to_ptr.vmem [resolvable:$true] %s93
      %s95 = sshll.u32 %s3, 4
      %s96 = int_to_ptr.hbm [resolvable:$true] %s95
      %101 = dma.vmem_to_hbm [thread:$0]  %s94, 256, %s96, [#allocation4], 128, 128, 8
    $region25: #{tpu_custom_call.1} parent=1 // pred_fallthru
      _
    // Predicated region
    $region26: #{tpu_custom_call.1} parent=1 // pred_check
      _
    $region27: #{tpu_custom_call.1} parent=1 // pred_check_branch
      %103 = sbr.rel (0) target = $region29
    $region28: #{tpu_custom_call.1} parent=1 // pred_region
      %105 = dma.done [#allocation4], 256
    $region29: #{tpu_custom_call.1} parent=1 // pred_fallthru
      _
    %106 = vsyncpa [#allocation3], 1
    %107 = vsyncpa [#allocation6], 1
    %108 = vsyncpa [#allocation4], 1

</llo_original>
